<compile_context>
chip_gen: v6e
topology: v6e:2x2x1
jax: 0.10.0
libtpu: 0.0.40
codegen_flags: <defaults>
</compile_context>

<pallas_src>
import jax
import jax.numpy as jnp
from jax.experimental import pallas as pl
from jax.experimental.pallas import tpu as pltpu

# Prefer wide, lane-dense slabs (multiples of the 128-lane vreg width).
_LANE_CHOICES = (1024, 512, 256, 128)
# ~2 MiB per block => (1 input + 1 output) x double-buffering ~ 8 MiB VMEM,
# comfortably under the scoped-VMEM defaults on v5e (16 MiB), v6e (32 MiB)
# and v7x (32 MiB of only 64 MiB physical) without raising vmem_limit_bytes.
_TARGET_BLOCK_BYTES = 2 * 1024 * 1024


def _neg_scale_kernel(alpha_ref, g_ref, o_ref):
    # grad_in = -alpha * grad_out  (elementwise on one big lane-dense tile)
    scale = (-alpha_ref[0]).astype(o_ref.dtype)
    o_ref[...] = g_ref[...] * scale


def _pallas_neg_scale(g, alpha):
    """Compute -alpha * g with a Pallas TPU kernel (no pad/unpad HBM copies)."""
    n = g.size
    if n == 0:
        return g

    alpha_smem = jnp.asarray(alpha, dtype=jnp.float32).reshape(1)
    itemsize = jnp.dtype(g.dtype).itemsize

    lanes = next((l for l in _LANE_CHOICES if n % l == 0), None)
    if lanes is not None:
        # Lane-dense path: free reshape of the contiguous array to (rows, lanes)
        # and tile along rows.
        rows = n // lanes
        g2d = g.reshape(rows, lanes)
        # dtype-aware sublane packing: row blocks in multiples of 8/16/32.
        pack = 8 * max(1, 4 // itemsize)
        max_rows = max(1, _TARGET_BLOCK_BYTES // (lanes * itemsize))
        if rows <= max_rows:
            row_block = rows          # block dim == full array dim -> legal
        else:
            row_block = max(pack, (max_rows // pack) * pack)
        block = (row_block, lanes)
        grid = (pl.cdiv(rows, row_block),)     # ragged tail masked by Pallas
        index_map = lambda i: (i, 0)
    else:
        # Odd total size (not a multiple of 128): present as a (1, n) slab and
        # tile along lanes.  Block last dim is a multiple of 128 (or the full
        # extent), so the (8,128) constraint is satisfied; the tail block is a
        # masked partial store.
        g2d = g.reshape(1, n)
        max_lanes = max(128, ((_TARGET_BLOCK_BYTES // itemsize) // 128) * 128)
        lane_block = n if n <= max_lanes else max_lanes
        block = (1, lane_block)
        grid = (pl.cdiv(n, lane_block),)
        index_map = lambda i: (0, i)

    o2d = pl.pallas_call(
        _neg_scale_kernel,
        out_shape=jax.ShapeDtypeStruct(g2d.shape, g2d.dtype),
        grid=grid,
        in_specs=[
            pl.BlockSpec(memory_space=pltpu.MemorySpace.SMEM),  # alpha scalar
            pl.BlockSpec(block, index_map),
        ],
        out_specs=pl.BlockSpec(block, index_map),
        compiler_params=pltpu.CompilerParams(
            dimension_semantics=("parallel",)),   # lets v7x shard across 2 TCs
    )(alpha_smem, g2d)
    return o2d.reshape(g.shape)


@jax.custom_vjp
def gradient_reverse(x, alpha):
    # Forward is semantically identity -> no kernel, no extra HBM traffic.
    return x


def _gr_fwd(x, alpha):
    return x, alpha


def _gr_bwd(alpha, g):
    # d/dx = -alpha * g via the Pallas kernel; alpha is a non-trainable buffer.
    return _pallas_neg_scale(g, alpha), jnp.zeros_like(jnp.asarray(alpha))


gradient_reverse.defvjp(_gr_fwd, _gr_bwd)


class GradientReverse:
    """JAX/Pallas equivalent of the PyTorch GradientReverse module."""

    def __init__(self, alpha=1.0):
        self.alpha = jnp.asarray(alpha, dtype=jnp.float32)

    def __call__(self, x):
        return gradient_reverse(x, self.alpha)


if __name__ == "__main__":
    key = jax.random.PRNGKey(0)
    x = jax.random.normal(key, (2, 4, 16, 16), dtype=jnp.float32)  # NCHW

    module = GradientReverse(alpha=1.0)

    # Forward pass: pure identity, no kernel launched.
    y = jax.block_until_ready(module(x))
    assert y.shape == x.shape and y.dtype == x.dtype
    assert bool(jnp.allclose(y, x)), "forward must be identity"

    # Backward pass exercises the Pallas -alpha*g kernel (lane-dense path).
    grad_x = jax.block_until_ready(jax.grad(lambda xx: module(xx).sum())(x))
    assert bool(jnp.allclose(grad_x, -module.alpha * jnp.ones_like(x)))

    # Odd (non-128-divisible) size exercises the lane-tiled fallback path.
    x_odd = jax.random.normal(key, (3, 5, 7, 13), dtype=jnp.float32)
    grad_odd = jax.block_until_ready(
        jax.grad(lambda xx: GradientReverse(alpha=2.5)(xx).sum())(x_odd))
    assert bool(jnp.allclose(grad_odd, -2.5 * jnp.ones_like(x_odd)))

    print("KERNEL_OK")
</pallas_src>

<mosaic_0001>
module attributes {stable_mosaic.version = 11 : i64} {
  func.func @_neg_scale_kernel(%arg0: i32, %arg1: memref<1xf32, #tpu.memory_space<smem>>, %arg2: memref<2x1024xf32, #tpu.memory_space<vmem>>, %arg3: memref<2x1024xf32, #tpu.memory_space<vmem>>) attributes {dimension_semantics = [#tpu.dimension_semantics<parallel>], iteration_bounds = array<i64: 1>, scalar_prefetch = 0 : i64, scratch_operands = 0 : i64, tpu.core_type = #tpu.core_type<tc>, window_params = [{transform_indices = @transform_0, window_bounds = array<i64: 1>}, {transform_indices = @transform_1, window_bounds = array<i64: 2, 1024>}, {transform_indices = @transform_2, window_bounds = array<i64: 2, 1024>}]} {
    %c0 = arith.constant 0 : index
    %0 = memref.load %arg1[%c0] : memref<1xf32, #tpu.memory_space<smem>>
    %cst = arith.constant 0.000000e+00 : f32
    %1 = arith.subf %cst, %0 : f32
    %c0_0 = arith.constant 0 : index
    %c0_1 = arith.constant 0 : index
    %2 = vector.load %arg2[%c0_0, %c0_1] : memref<2x1024xf32, #tpu.memory_space<vmem>>, vector<2x1024xf32>
    %3 = vector.broadcast %1 : f32 to vector<2x1024xf32>
    %4 = arith.mulf %2, %3 : vector<2x1024xf32>
    %c0_2 = arith.constant 0 : index
    %c0_3 = arith.constant 0 : index
    %5 = vector.load %arg3[%c0_2, %c0_3] : memref<2x1024xf32, #tpu.memory_space<vmem>>, vector<2x1024xf32>
    tpu.vector_store %arg3[%c0_2, %c0_3], %4 {strides = array<i32>} : memref<2x1024xf32, #tpu.memory_space<vmem>>, vector<2x1024xf32>,
    return
  }
  func.func @transform_0(%arg0: i32) -> i32 {
    %c0_i32 = arith.constant 0 : i32
    %c0_i32_0 = arith.constant 0 : i32
    return %c0_i32 : i32
  }
  func.func @transform_1(%arg0: i32) -> (i32, i32) {
    %c0_i32 = arith.constant 0 : i32
    %c0_i32_0 = arith.constant 0 : i32
    return %arg0, %c0_i32 : i32, i32
  }
  func.func @transform_2(%arg0: i32) -> (i32, i32) {
    %c0_i32 = arith.constant 0 : i32
    %c0_i32_0 = arith.constant 0 : i32
    return %arg0, %c0_i32 : i32, i32
  }
}

</mosaic_0001>

<llo_original>
// kernel: tpu_custom_call.1
$region0: #{tpu_custom_call.1}
  #allocation0 [shape = 'u32[]', space=smem, size = 0x4, offset = 0x4, fixed_abs, tag = 'smem constant byte address 0x4 - core index']
  #allocation1 [shape = 'u32[144,128]{1,0:T(1,128)}', space=vmem, size = 0x12000, scoped, tag = 'internal scratch']
  #allocation2 [shape = 'f32[1]{0:T(128)S(6)}', space=smem, size = 0x200, scoped, tag = 'scoped memory for tpu_custom_call.1']
  %s0 = inlined_call_operand.<no memory space> [shape: f32[1], index: 0, kind: input, shape index: {}]
  %s1 = inlined_call_operand.hbm [shape: f32[2,1024], index: 1, kind: input, shape index: {}]
  %s2 = inlined_call_operand.hbm [shape: f32[2,1024], index: 2, kind: output, shape index: {}]
  %s3 = sld [smem:[#allocation0]]
  $region22: #{tpu_custom_call.1} parent=0
    _
  %s5 = ssub.s32 1, %s3
  %s6 = scalar_select 0, %s5, %s3
  %7 = sst [smem:[#allocation2]] %s0
  $region1: #{tpu_custom_call.1} parent=0
    #allocation3 [shape = 'u8[8192]{0}', space=vmem, size = 0x2000, scoped, tag = 'input window, operand 1, single buffered']
    #allocation4 [shape = 's32[1]{0}', space=sflag, size = 0x4, scoped, tag = 'scoped memory for tpu_custom_call.1']
    #allocation5 [shape = 's32[1]{0}', space=sflag, size = 0x4, scoped, tag = 'scoped memory for tpu_custom_call.1']
    #allocation6 [shape = 'u8[8192]{0}', space=vmem, size = 0x2000, scoped, tag = 'output window, operand 0, single buffered']
    %8 = vsyncpa [#allocation4], 0
    %9 = vsyncpa [#allocation5], 0
    // Predicated region
    $region2: #{tpu_custom_call.1} parent=1 // pred_check
      _
    $region3: #{tpu_custom_call.1} parent=1 // pred_check_branch
      %11 = sbr.rel (0) target = $region5
    $region4: #{tpu_custom_call.1} parent=1 // pred_region
      _
    $region5: #{tpu_custom_call.1} parent=1 // pred_fallthru
      _
    // Predicated region
    $region6: #{tpu_custom_call.1} parent=1 // pred_check
      _
    $region7: #{tpu_custom_call.1} parent=1 // pred_check_branch
      %13 = sbr.rel (0) target = $region9
    $region8: #{tpu_custom_call.1} parent=1 // pred_region
      %s15 = ssub.s32 256, 256
      %16 = vsyncadd [#allocation4], %s15
      %s18 = sshll.u32 [#allocation3], 4
      %s19 = int_to_ptr.vmem [resolvable:$true] %s18
      %21 = dma.hbm_to_vmem [thread:$0]  %s1, 256, %s19, [#allocation4]
    $region9: #{tpu_custom_call.1} parent=1 // pred_fallthru
      _
    // Predicated region
    $region10: #{tpu_custom_call.1} parent=1 // pred_check
      _
    $region11: #{tpu_custom_call.1} parent=1 // pred_check_branch
      %23 = sbr.rel (0) target = $region13
    $region12: #{tpu_custom_call.1} parent=1 // pred_region
      %24 = dma.done [#allocation4], 256
    $region13: #{tpu_custom_call.1} parent=1 // pred_fallthru
      _
    %s25 = sld [smem:[#allocation2]]
    %s26 = ssub.f32 0.0, %s25
    %v27 = vld [vmem:[#allocation3] sm:$0xff]
    %v28 = vld [vmem:[#allocation3 + $0x8] sm:$0xff]
    %v29 = vstv %s26
    %v30 = vmul.f32 %v27, %v29
    %v31 = vmul.f32 %v28, %v29
    %32 = vst [vmem:[#allocation6] sm:$0xff] %v30
    %33 = vst [vmem:[#allocation6 + $0x8] sm:$0xff] %v31
    // Predicated region
    $region14: #{tpu_custom_call.1} parent=1 // pred_check
      _
    $region15: #{tpu_custom_call.1} parent=1 // pred_check_branch
      %35 = sbr.rel (0) target = $region17
    $region16: #{tpu_custom_call.1} parent=1 // pred_region
      %s37 = ssub.s32 256, 256
      %38 = vsyncadd [#allocation5], %s37
      %s40 = sshll.u32 [#allocation6], 4
      %s41 = int_to_ptr.vmem [resolvable:$true] %s40
      %43 = dma.vmem_to_hbm [thread:$0]  %s41, 256, %s2, [#allocation5]
    $region17: #{tpu_custom_call.1} parent=1 // pred_fallthru
      _
    // Predicated region
    $region18: #{tpu_custom_call.1} parent=1 // pred_check
      _
    $region19: #{tpu_custom_call.1} parent=1 // pred_check_branch
      %45 = sbr.rel (0) target = $region21
    $region20: #{tpu_custom_call.1} parent=1 // pred_region
      %46 = dma.done [#allocation5], 256
    $region21: #{tpu_custom_call.1} parent=1 // pred_fallthru
      _
    %47 = vsyncpa [#allocation4], 1
    %48 = vsyncpa [#allocation5], 1

</llo_original>
